<compile_context>
chip_gen: v6e
topology: v6e:2x2x1
jax: 0.10.0
libtpu: 0.0.40
codegen_flags: <defaults>
</compile_context>

<pallas_src>
import jax
import jax.numpy as jnp
from jax.experimental import pallas as pl
from jax.experimental.pallas import tpu as pltpu

K_SIZE = 3
STRIDE = 2
PADDING = 1
OUTPUT_PADDING = 1
BN_EPS = 1e-5
LRELU_SLOPE = 0.01  # nn.LeakyReLU default negative_slope

# kidx[(parity, tap_offset)] -> kernel index along that spatial dim (None = tap unused)
_KIDX = {(0, 0): 1, (0, 1): None, (1, 0): 2, (1, 1): 0}

# Tile-sizing budget / scoped-VMEM limit: sized for v7x (64 MiB per TC, default scoped
# 32 MiB); also safe on v5e/v6e (128 MiB).  v6e could run ~2x larger tiles, but tiles
# chosen under this budget already reach the >=512-row high-roofline regime.
_VMEM_BUDGET = 40 * 1024 * 1024
_VMEM_LIMIT = 48 * 1024 * 1024


def _conv_kernel(p_ref, w_ref, y_ref, psum_ref, pssq_ref):
    # p_ref:  (1, TD*H*W, 8*Cin)  bf16 pre-built polyphase patch rows
    # w_ref:  (8*Cin, CP)         bf16 polyphase weight (parity classes in the lanes)
    # y_ref:  (1, TD*H*W, CP)     bf16 parity-packed conv output rows
    # psum_ref/pssq_ref: (1, 1, 1, CP) f32 per-program partial sums for BN stats
    rows = p_ref.shape[1]
    CP = y_ref.shape[-1]

    patch = p_ref[0]                                             # (rows, 8*Cin) bf16
    acc = jnp.dot(patch, w_ref[...],
                  preferred_element_type=jnp.float32)            # (rows, CP) f32 on MXU

    # Per-program partial statistics in f32 (no cross-step accumulator -> grid stays
    # fully 'parallel'); reduced in the wrapper.
    psum_ref[...] = jnp.sum(acc, axis=0, keepdims=True).reshape(1, 1, 1, CP)
    pssq_ref[...] = jnp.sum(acc * acc, axis=0, keepdims=True).reshape(1, 1, 1, CP)

    # Lane-dense bf16 writeback of the conv intermediate (halves HBM bytes vs f32).
    y_ref[...] = acc.astype(y_ref.dtype).reshape(1, rows, CP)


def _build_polyphase_weight(w, Cout_pad):
    """w: (Cin, Cout, 3, 3, 3) PyTorch ConvTranspose3d weight -> (8*Cin, 8*Cout_pad)."""
    Cin, Cout = w.shape[0], w.shape[1]
    rows = []
    for od in (0, 1):
        for oh in (0, 1):
            for ow in (0, 1):
                cols = []
                for rd in (0, 1):
                    for rh in (0, 1):
                        for rw in (0, 1):
                            kd = _KIDX[(rd, od)]
                            kh = _KIDX[(rh, oh)]
                            kw = _KIDX[(rw, ow)]
                            if kd is None or kh is None or kw is None:
                                blk = jnp.zeros((Cin, Cout_pad), w.dtype)
                            else:
                                blk = jnp.pad(w[:, :, kd, kh, kw],
                                              ((0, 0), (0, Cout_pad - Cout)))
                            cols.append(blk)
                rows.append(jnp.concatenate(cols, axis=1))       # (Cin, 8*Cout_pad)
    return jnp.concatenate(rows, axis=0)                         # (8*Cin, 8*Cout_pad)


def _pick_depth_tile(D, HW, Cin, CP):
    """Largest divisor TD of D whose double-buffered working set fits the VMEM budget,
    stopping once the per-dot row count is comfortably past the ~512-row roofline knee."""
    kc = 8 * Cin
    best = 1
    for td in range(1, D + 1):
        if D % td:
            continue
        rows = td * HW
        if rows % 8 and td != D:          # keep blocks sublane-aligned
            continue
        est = (2 * rows * kc * 2          # bf16 patch input, double-buffered
               + 2 * rows * CP * 2        # bf16 conv output, double-buffered
               + 2 * rows * CP * 4        # f32 acc / acc^2 temporaries
               + 2 * kc * CP * 2)         # bf16 weight, double-buffered
        if est > _VMEM_BUDGET:
            break
        best = td
        if rows >= 1024:                  # enough rows; bigger tiles buy nothing
            break
    if (best * HW) % 8 and best != D:     # fall back to a full-extent block if misaligned
        best = D
    return best


def conv_transpose_block(x, w, b, gamma, beta):
    """x: (N, Cin, D, H, W) f32 NCDHW; w: (Cin, Cout, 3, 3, 3) ConvTranspose3d weight.

    Note: `b` (conv bias) is accepted for API parity but not applied — training-mode
    BatchNorm cancels a per-channel constant bias exactly, so the fused output is
    identical.  (Only valid for training-mode BN, as in the reference module.)
    """
    del b
    N, Cin, D, H, W = x.shape
    Cout = w.shape[1]
    Do, Ho, Wo = 2 * D, 2 * H, 2 * W
    Cout_pad = ((Cout + 15) // 16) * 16     # 8*Cout_pad is a multiple of 128 (lane-dense)
    CP = 8 * Cout_pad
    HW = H * W

    # --- Wrapper-side im2col (polyphase patch), bf16, halo baked in -------------------
    xl = jnp.transpose(x, (0, 2, 3, 4, 1))                       # (N, D, H, W, Cin)
    xp = jnp.pad(xl, ((0, 0), (0, 1), (0, 1), (0, 1), (0, 0)))   # high-side halo
    taps = []
    for od in (0, 1):
        for oh in (0, 1):
            for ow in (0, 1):
                taps.append(xp[:, od:od + D, oh:oh + H, ow:ow + W, :])
    patch = jnp.concatenate(taps, axis=-1)                       # (N, D, H, W, 8*Cin)
    patch = patch.reshape(N, D * HW, 8 * Cin).astype(jnp.bfloat16)

    wbig = _build_polyphase_weight(w, Cout_pad).astype(jnp.bfloat16)   # (8*Cin, CP)

    # --- Pallas conv kernel: one MXU dot per (batch, depth-tile) grid step ------------
    TD = _pick_depth_tile(D, HW, Cin, CP)
    GD = D // TD
    ROWS = TD * HW

    conv_out, psum, pssq = pl.pallas_call(
        _conv_kernel,
        out_shape=(
            jax.ShapeDtypeStruct((N, D * HW, CP), jnp.bfloat16),
            jax.ShapeDtypeStruct((N, GD, 1, CP), jnp.float32),
            jax.ShapeDtypeStruct((N, GD, 1, CP), jnp.float32),
        ),
        grid=(N, GD),
        in_specs=[
            pl.BlockSpec((1, ROWS, 8 * Cin), lambda n, d: (n, d, 0)),
            pl.BlockSpec((8 * Cin, CP), lambda n, d: (0, 0)),
        ],
        out_specs=(
            pl.BlockSpec((1, ROWS, CP), lambda n, d: (n, d, 0)),
            pl.BlockSpec((1, 1, 1, CP), lambda n, d: (n, d, 0, 0)),
            pl.BlockSpec((1, 1, 1, CP), lambda n, d: (n, d, 0, 0)),
        ),
        compiler_params=pltpu.CompilerParams(
            dimension_semantics=("parallel", "parallel"),
            vmem_limit_bytes=_VMEM_LIMIT),
    )(patch, wbig)

    # --- BatchNorm3d (training mode) stats: reduce the per-program partials ----------
    # Each real channel c lives at lanes p*Cout_pad + c for the 8 parity classes p.
    # TODO(synk): running_mean/running_var buffer updates are stateful training
    # bookkeeping and do not affect this forward output; not materialized here.
    count = N * Do * Ho * Wo
    ch_sum = jnp.sum(psum, axis=(0, 1, 2)).reshape(8, Cout_pad).sum(axis=0)[:Cout]
    ch_ssq = jnp.sum(pssq, axis=(0, 1, 2)).reshape(8, Cout_pad).sum(axis=0)[:Cout]
    mean = ch_sum / count
    var = jnp.maximum(ch_ssq / count - mean * mean, 0.0)         # cancellation guard
    scale = gamma / jnp.sqrt(var + BN_EPS)
    shift = beta - mean * scale

    # --- Fused epilogue (plain jnp; XLA fuses it into the un-interleave transpose) ----
    # One HBM read of conv_out (bf16) + one write of the final f32 output; no extra pass.
    y = conv_out.reshape(N, D, H, W, 2, 2, 2, Cout_pad)[..., :Cout]   # drop dead lanes
    z = y.astype(jnp.float32) * scale + shift
    z = jnp.where(z >= 0, z, LRELU_SLOPE * z)
    z = jnp.transpose(z, (0, 7, 1, 4, 2, 5, 3, 6))               # (N, C, D,2, H,2, W,2)
    return z.reshape(N, Cout, Do, Ho, Wo)


def _reference(x, w, b, gamma, beta):
    """Pure-JAX reference of the PyTorch module forward (training-mode BN), f32."""
    K = K_SIZE
    w_conv = jnp.transpose(jnp.flip(w, axis=(2, 3, 4)), (1, 0, 2, 3, 4))  # (Cout,Cin,K,K,K)
    pad = (K - 1 - PADDING, K - 1 - PADDING + OUTPUT_PADDING)
    y = jax.lax.conv_general_dilated(
        x, w_conv, window_strides=(1, 1, 1), padding=[pad, pad, pad],
        lhs_dilation=(STRIDE, STRIDE, STRIDE),
        dimension_numbers=("NCDHW", "OIDHW", "NCDHW"))
    y = y + b[None, :, None, None, None]
    mean = jnp.mean(y, axis=(0, 2, 3, 4), keepdims=True)
    var = jnp.var(y, axis=(0, 2, 3, 4), keepdims=True)
    z = (y - mean) / jnp.sqrt(var + BN_EPS)
    z = z * gamma[None, :, None, None, None] + beta[None, :, None, None, None]
    return jnp.where(z >= 0, z, LRELU_SLOPE * z)


if __name__ == "__main__":
    key = jax.random.PRNGKey(0)
    k1, k2, k3 = jax.random.split(key, 3)

    N, Cin, Cout, D, H, W = 2, 4, 8, 8, 8, 8
    x = jax.random.normal(k1, (N, Cin, D, H, W), jnp.float32)
    w = 0.1 * jax.random.normal(k2, (Cin, Cout, K_SIZE, K_SIZE, K_SIZE), jnp.float32)
    b = 0.1 * jax.random.normal(k3, (Cout,), jnp.float32)
    gamma = jnp.ones((Cout,), jnp.float32)   # BatchNorm3d default weight
    beta = jnp.zeros((Cout,), jnp.float32)   # BatchNorm3d default bias

    fwd = jax.jit(conv_transpose_block)
    out = jax.block_until_ready(fwd(x, w, b, gamma, beta))
    assert out.shape == (N, Cout, 2 * D, 2 * H, 2 * W), out.shape

    ref = _reference(x, w, b, gamma, beta)
    # bf16 data path on BN-normalized (unit-variance) outputs: 2e-2 tolerance is the
    # appropriate bound (f32 MXU accumulation; only input/intermediate rounding differs).
    if not jnp.allclose(out, ref, atol=2e-2, rtol=2e-2):
        err = float(jnp.max(jnp.abs(out - ref)))
        raise AssertionError(f"Pallas output mismatch vs JAX reference (max abs err {err})")
    print("KERNEL_OK")
</pallas_src>

<mosaic_0001>
module attributes {stable_mosaic.version = 11 : i64} {
  func.func @_conv_kernel(%arg0: i32, %arg1: i32, %arg2: memref<1x512x32xbf16, #tpu.memory_space<vmem>>, %arg3: memref<32x128xbf16, #tpu.memory_space<vmem>>, %arg4: memref<1x512x128xbf16, #tpu.memory_space<vmem>>, %arg5: memref<1x1x1x128xf32, #tpu.memory_space<vmem>>, %arg6: memref<1x1x1x128xf32, #tpu.memory_space<vmem>>) attributes {dimension_semantics = [#tpu.dimension_semantics<parallel>, #tpu.dimension_semantics<parallel>], iteration_bounds = array<i64: 2, 1>, scalar_prefetch = 0 : i64, scratch_operands = 0 : i64, tpu.core_type = #tpu.core_type<tc>, window_params = [{transform_indices = @transform_0, window_bounds = array<i64: 1, 512, 32>}, {pipeline_mode = #tpu.pipeline_mode<synchronous>, transform_indices = @transform_1, window_bounds = array<i64: 32, 128>}, {transform_indices = @transform_2, window_bounds = array<i64: 1, 512, 128>}, {transform_indices = @transform_3, window_bounds = array<i64: 1, 1, 1, 128>}, {transform_indices = @transform_4, window_bounds = array<i64: 1, 1, 1, 128>}]} {
    %c0 = arith.constant 0 : index
    %c0_0 = arith.constant 0 : index
    %c0_1 = arith.constant 0 : index
    %0 = vector.load %arg2[%c0, %c0_0, %c0_1] : memref<1x512x32xbf16, #tpu.memory_space<vmem>>, vector<1x512x32xbf16>
    %1 = vector.shape_cast %0 : vector<1x512x32xbf16> to vector<512x32xbf16>
    %c0_2 = arith.constant 0 : index
    %c0_3 = arith.constant 0 : index
    %2 = vector.load %arg3[%c0_2, %c0_3] : memref<32x128xbf16, #tpu.memory_space<vmem>>, vector<32x128xbf16>
    %cst = arith.constant dense<0.000000e+00> : vector<512x128xf32>
    %3 = tpu.matmul %1, %2, %cst {dimension_numbers = #tpu.dot_dimension_numbers<[1], [0], [0], [1], [0, 0, 1, 1], [], []>} : vector<512x32xbf16>, vector<32x128xbf16>, vector<512x128xf32> -> vector<512x128xf32>
    %cst_4 = arith.constant dense<0.000000e+00> : vector<128xf32>
    %4 = vector.multi_reduction <add>, %3, %cst_4 [0] : vector<512x128xf32> to vector<128xf32>
    %5 = vector.shape_cast %4 : vector<128xf32> to vector<1x128xf32>
    %6 = vector.shape_cast %5 : vector<1x128xf32> to vector<1x1x1x128xf32>
    %c0_5 = arith.constant 0 : index
    %c0_6 = arith.constant 0 : index
    %c0_7 = arith.constant 0 : index
    %c0_8 = arith.constant 0 : index
    %7 = vector.load %arg5[%c0_5, %c0_6, %c0_7, %c0_8] : memref<1x1x1x128xf32, #tpu.memory_space<vmem>>, vector<1x1x1x128xf32>
    tpu.vector_store %arg5[%c0_5, %c0_6, %c0_7, %c0_8], %6 {strides = array<i32>} : memref<1x1x1x128xf32, #tpu.memory_space<vmem>>, vector<1x1x1x128xf32>,
    %8 = arith.mulf %3, %3 : vector<512x128xf32>
    %cst_9 = arith.constant dense<0.000000e+00> : vector<128xf32>
    %9 = vector.multi_reduction <add>, %8, %cst_9 [0] : vector<512x128xf32> to vector<128xf32>
    %10 = vector.shape_cast %9 : vector<128xf32> to vector<1x128xf32>
    %11 = vector.shape_cast %10 : vector<1x128xf32> to vector<1x1x1x128xf32>
    %c0_10 = arith.constant 0 : index
    %c0_11 = arith.constant 0 : index
    %c0_12 = arith.constant 0 : index
    %c0_13 = arith.constant 0 : index
    %12 = vector.load %arg6[%c0_10, %c0_11, %c0_12, %c0_13] : memref<1x1x1x128xf32, #tpu.memory_space<vmem>>, vector<1x1x1x128xf32>
    tpu.vector_store %arg6[%c0_10, %c0_11, %c0_12, %c0_13], %11 {strides = array<i32>} : memref<1x1x1x128xf32, #tpu.memory_space<vmem>>, vector<1x1x1x128xf32>,
    %13 = arith.truncf %3 : vector<512x128xf32> to vector<512x128xbf16>
    %14 = vector.shape_cast %13 : vector<512x128xbf16> to vector<1x512x128xbf16>
    %c0_14 = arith.constant 0 : index
    %c0_15 = arith.constant 0 : index
    %c0_16 = arith.constant 0 : index
    %15 = vector.load %arg4[%c0_14, %c0_15, %c0_16] : memref<1x512x128xbf16, #tpu.memory_space<vmem>>, vector<1x512x128xbf16>
    tpu.vector_store %arg4[%c0_14, %c0_15, %c0_16], %14 {strides = array<i32>} : memref<1x512x128xbf16, #tpu.memory_space<vmem>>, vector<1x512x128xbf16>,
    return
  }
  func.func @transform_0(%arg0: i32, %arg1: i32) -> (i32, i32, i32) {
    %c0_i32 = arith.constant 0 : i32
    %c0_i32_0 = arith.constant 0 : i32
    return %arg0, %arg1, %c0_i32 : i32, i32, i32
  }
  func.func @transform_1(%arg0: i32, %arg1: i32) -> (i32, i32) {
    %c0_i32 = arith.constant 0 : i32
    %c0_i32_0 = arith.constant 0 : i32
    %c0_i32_1 = arith.constant 0 : i32
    return %c0_i32, %c0_i32_0 : i32, i32
  }
  func.func @transform_2(%arg0: i32, %arg1: i32) -> (i32, i32, i32) {
    %c0_i32 = arith.constant 0 : i32
    %c0_i32_0 = arith.constant 0 : i32
    return %arg0, %arg1, %c0_i32 : i32, i32, i32
  }
  func.func @transform_3(%arg0: i32, %arg1: i32) -> (i32, i32, i32, i32) {
    %c0_i32 = arith.constant 0 : i32
    %c0_i32_0 = arith.constant 0 : i32
    %c0_i32_1 = arith.constant 0 : i32
    return %arg0, %arg1, %c0_i32, %c0_i32_0 : i32, i32, i32, i32
  }
  func.func @transform_4(%arg0: i32, %arg1: i32) -> (i32, i32, i32, i32) {
    %c0_i32 = arith.constant 0 : i32
    %c0_i32_0 = arith.constant 0 : i32
    %c0_i32_1 = arith.constant 0 : i32
    return %arg0, %arg1, %c0_i32, %c0_i32_0 : i32, i32, i32, i32
  }
}

</mosaic_0001>

<llo_original>
// kernel: conv_transpose_block.1
$region0: #{conv_transpose_block.1}
  #allocation0 [shape = 'u32[]', space=smem, size = 0x4, offset = 0x4, fixed_abs, tag = 'smem constant byte address 0x4 - core index']
  #allocation1 [shape = 'u32[144,128]{1,0:T(1,128)}', space=vmem, size = 0x12000, scoped, tag = 'internal scratch']
  %s0 = inlined_call_operand.vmem [shape: bf16[2,512,32], index: 0, kind: input, shape index: {}]
  %s1 = inlined_call_operand.vmem [shape: bf16[32,128], index: 1, kind: input, shape index: {}]
  %s2 = inlined_call_operand.vmem [shape: bf16[2,512,128], index: 2, kind: output, shape index: {0}]
  %s3 = inlined_call_operand.vmem [shape: f32[2,1,1,128], index: 3, kind: output, shape index: {1}]
  %s4 = inlined_call_operand.vmem [shape: f32[2,1,1,128], index: 4, kind: output, shape index: {2}]
  %5 = xla_tuple %s2, %s3, %s4
  %s6 = sld [smem:[#allocation0]]
  $region57: #{conv_transpose_block.1} parent=0
    _
  %s8 = ssub.s32 1, %s6
  %s9 = scalar_select 0, %s8, %s6
  loop: start=0, step=1, limit=4
  $region2: #{conv_transpose_block.1} parent=0 // loop_pre_header
    _
  $region3: #{conv_transpose_block.1} parent=0 // loop_header
    %s11 = sphi 0, %s15
    %p12 = scmp.ge.s32.totalorder %s11, 4
    %s18 = sphi 0, %s30
    %s19 = sphi 0, %s26
    %s20 = sphi 0, %s18
    %s21 = sphi 0, %s19
    %s22 = sphi 0, %s20
    %s23 = sphi 0, %s21
    %s35 = sphi 0, %s37
    %s38 = sphi 0, %s35
    %s39 = sphi 0, %s38
    %s55 = sphi 0, %s39
    %s59 = sphi 0, %s59
    %s61 = sphi 0, %s59
    %s62 = sphi 0, %s61
    %s76 = sphi 0, %s62
    %s84 = sphi 0, %s86
    %s87 = sphi 0, %s84
    %s88 = sphi 0, %s87
    %s104 = sphi 0, %s88
    %s112 = sphi 0, %s114
    %s115 = sphi 0, %s112
    %s116 = sphi 0, %s115
    %s132 = sphi 0, %s116
    %s140 = sphi 0, %s142
    %s143 = sphi 0, %s140
    %s144 = sphi 0, %s143
    %s160 = sphi 0, %s144
  $region4: #{conv_transpose_block.1} parent=0 // loop_header_branch
    %14 = sbr.rel (%p12) target = $region8
  $region5: #{conv_transpose_block.1} parent=0 // loop_body
    %s16 = ssub.s32 %s11, 1
    %s17 = ssub.s32 %s11, 2
    %s24 = sadd.s32 1, %s19
    %p25 = scmp.ge.s32.totalorder %s24, 1
    %s26 = scalar_select %p25, 0, %s24
    %s27 = sadd.s32 1, %s18
    %s28 = scalar_select %p25, %s27, %s18
    %p29 = scmp.ge.s32.totalorder %s28, 2
    %s30 = scalar_select %p29, 0, %s28
    %s31 = ssub.s32 %s18, %s30
    %s32 = ssub.s32 %s19, %s26
    %s33 = sor.u32 %s31, %s32
    %p34 = scmp.eq.s32.totalorder %s33, 0
    %s36 = sadd.s32 %s35, 1
    %s37 = scalar_select %p34, %s35, %s36
    %p40 = pneg %p34
    %p41 = scmp.eq.s32.totalorder %s11, 1
    %p42 = por %p40, %p41
    %p43 = scmp.ne.s32.totalorder %s35, %s38
    %p44 = scmp.eq.s32.totalorder %s11, 0
    %p45 = por %p43, %p44
    %p46 = scmp.ne.s32.totalorder %s35, %s38
    %p47 = scmp.eq.s32.totalorder %s16, 1
    %p48 = por %p46, %p47
    %p49 = scmp.ne.s32.totalorder %s38, %s39
    %p50 = scmp.eq.s32.totalorder %s16, 0
    %p51 = por %p49, %p50
    %p52 = scmp.ne.s32.totalorder %s38, %s39
    %p53 = scmp.eq.s32.totalorder %s17, 1
    %p54 = por %p52, %p53
    %p56 = scmp.ne.s32.totalorder %s39, %s55
    %p57 = scmp.eq.s32.totalorder %s17, 0
    %p58 = por %p56, %p57
    %s60 = sadd.s32 %s59, 1
    %p63 = scmp.eq.s32.totalorder %s11, 1
    %p64 = scmp.ne.s32.totalorder %s59, %s61
    %p65 = scmp.eq.s32.totalorder %s11, 0
    %p66 = por %p64, %p65
    %p67 = scmp.ne.s32.totalorder %s59, %s61
    %p68 = scmp.eq.s32.totalorder %s16, 1
    %p69 = por %p67, %p68
    %p70 = scmp.ne.s32.totalorder %s61, %s62
    %p71 = scmp.eq.s32.totalorder %s16, 0
    %p72 = por %p70, %p71
    %p73 = scmp.ne.s32.totalorder %s61, %s62
    %p74 = scmp.eq.s32.totalorder %s17, 1
    %p75 = por %p73, %p74
    %p77 = scmp.ne.s32.totalorder %s62, %s76
    %p78 = scmp.eq.s32.totalorder %s17, 0
    %p79 = por %p77, %p78
    %s80 = ssub.s32 %s18, %s30
    %s81 = ssub.s32 %s19, %s26
    %s82 = sor.u32 %s80, %s81
    %p83 = scmp.eq.s32.totalorder %s82, 0
    %s85 = sadd.s32 %s84, 1
    %s86 = scalar_select %p83, %s84, %s85
    %p89 = pneg %p83
    %p90 = scmp.eq.s32.totalorder %s11, 1
    %p91 = por %p89, %p90
    %p92 = scmp.ne.s32.totalorder %s84, %s87
    %p93 = scmp.eq.s32.totalorder %s11, 0
    %p94 = por %p92, %p93
    %p95 = scmp.ne.s32.totalorder %s84, %s87
    %p96 = scmp.eq.s32.totalorder %s16, 1
    %p97 = por %p95, %p96
    %p98 = scmp.ne.s32.totalorder %s87, %s88
    %p99 = scmp.eq.s32.totalorder %s16, 0
    %p100 = por %p98, %p99
    %p101 = scmp.ne.s32.totalorder %s87, %s88
    %p102 = scmp.eq.s32.totalorder %s17, 1
    %p103 = por %p101, %p102
    %p105 = scmp.ne.s32.totalorder %s88, %s104
    %p106 = scmp.eq.s32.totalorder %s17, 0
    %p107 = por %p105, %p106
    %s108 = ssub.s32 %s18, %s30
    %s109 = ssub.s32 %s19, %s26
    %s110 = sor.u32 %s108, %s109
    %p111 = scmp.eq.s32.totalorder %s110, 0
    %s113 = sadd.s32 %s112, 1
    %s114 = scalar_select %p111, %s112, %s113
    %p117 = pneg %p111
    %p118 = scmp.eq.s32.totalorder %s11, 1
    %p119 = por %p117, %p118
    %p120 = scmp.ne.s32.totalorder %s112, %s115
    %p121 = scmp.eq.s32.totalorder %s11, 0
    %p122 = por %p120, %p121
    %p123 = scmp.ne.s32.totalorder %s112, %s115
    %p124 = scmp.eq.s32.totalorder %s16, 1
    %p125 = por %p123, %p124
    %p126 = scmp.ne.s32.totalorder %s115, %s116
    %p127 = scmp.eq.s32.totalorder %s16, 0
    %p128 = por %p126, %p127
    %p129 = scmp.ne.s32.totalorder %s115, %s116
    %p130 = scmp.eq.s32.totalorder %s17, 1
    %p131 = por %p129, %p130
    %p133 = scmp.ne.s32.totalorder %s116, %s132
    %p134 = scmp.eq.s32.totalorder %s17, 0
    %p135 = por %p133, %p134
    %s136 = ssub.s32 %s18, %s30
    %s137 = ssub.s32 %s19, %s26
    %s138 = sor.u32 %s136, %s137
    %p139 = scmp.eq.s32.totalorder %s138, 0
    %s141 = sadd.s32 %s140, 1
    %s142 = scalar_select %p139, %s140, %s141
    %p145 = pneg %p139
    %p146 = scmp.eq.s32.totalorder %s11, 1
    %p147 = por %p145, %p146
    %p148 = scmp.ne.s32.totalorder %s140, %s143
    %p149 = scmp.eq.s32.totalorder %s11, 0
    %p150 = por %p148, %p149
    %p151 = scmp.ne.s32.totalorder %s140, %s143
    %p152 = scmp.eq.s32.totalorder %s16, 1
    %p153 = por %p151, %p152
    %p154 = scmp.ne.s32.totalorder %s143, %s144
    %p155 = scmp.eq.s32.totalorder %s16, 0
    %p156 = por %p154, %p155
    %p157 = scmp.ne.s32.totalorder %s143, %s144
    %p158 = scmp.eq.s32.totalorder %s17, 1
    %p159 = por %p157, %p158
    %p161 = scmp.ne.s32.totalorder %s144, %s160
    %p162 = scmp.eq.s32.totalorder %s17, 0
    %p163 = por %p161, %p162
    %p164 = scmp.le.s32.totalorder 1, %s11
    %p165 = scmp.lt.s32.totalorder %s11, 3
    %p166 = pnand %p164, %p165
    %p167 = pneg %p166
    // Predicated region
    $region9: #{conv_transpose_block.1} parent=5 // pred_check
      _
    $region10: #{conv_transpose_block.1} parent=5 // pred_check_branch
      %169 = sbr.rel (%p166) target = $region12
    $region11: #{conv_transpose_block.1} parent=5 // pred_region
      %s170 = ssub.s32 %s11, 1
      // Predicated region
      $region13: #{conv_transpose_block.1} parent=11 // pred_check
        %p171 = pneg %p72
      $region14: #{conv_transpose_block.1} parent=11 // pred_check_branch
        %173 = sbr.rel (%p171) target = $region16
      $region15: #{conv_transpose_block.1} parent=11 // pred_region
        _
      $region16: #{conv_transpose_block.1} parent=11 // pred_fallthru
        _
    $region12: #{conv_transpose_block.1} parent=5 // pred_fallthru
      _
    %p174 = scmp.lt.s32.totalorder %s11, 2
    // Predicated region
    $region17: #{conv_transpose_block.1} parent=5 // pred_check
      %p175 = pneg %p174
    $region18: #{conv_transpose_block.1} parent=5 // pred_check_branch
      %177 = sbr.rel (%p175) target = $region20
    $region19: #{conv_transpose_block.1} parent=5 // pred_region
      // Predicated region
      $region21: #{conv_transpose_block.1} parent=19 // pred_check
        %p178 = pneg %p45
      $region22: #{conv_transpose_block.1} parent=19 // pred_check_branch
        %180 = sbr.rel (%p178) target = $region24
      $region23: #{conv_transpose_block.1} parent=19 // pred_region
        %s181 = smul.u32 64, %s19
        %p182 = scmp.lt.s32.totalorder %s18, 1
        %s183 = scalar_select %p182, %s18, 1
        %p184 = scmp.lt.s32.totalorder %s181, 63
        %s185 = scalar_select %p184, %s181, 63
        %s186 = smul.addr %s183, 64
        %s187 = sadd.s32 %s185, %s186
        %s188 = smul.addr %s187, 4
        %s189 = scalar_lea.vmem %s0, %s188
        %s190 = smul.u32 64, %s19
      $region24: #{conv_transpose_block.1} parent=19 // pred_fallthru
        _
    $region20: #{conv_transpose_block.1} parent=5 // pred_fallthru
      _
    %p191 = scmp.le.s32.totalorder 1, %s11
    %p192 = scmp.lt.s32.totalorder %s11, 3
    %p193 = pnand %p191, %p192
    %p194 = pneg %p193
    // Predicated region
    $region25: #{conv_transpose_block.1} parent=5 // pred_check
      _
    $region26: #{conv_transpose_block.1} parent=5 // pred_check_branch
      %196 = sbr.rel (%p193) target = $region28
    $region27: #{conv_transpose_block.1} parent=5 // pred_region
      %s197 = ssub.s32 %s11, 1
      %s198 = smul.u32 64, %s21
      %p199 = scmp.lt.s32.totalorder %s20, 1
      %s200 = scalar_select %p199, %s20, 1
      %p201 = scmp.lt.s32.totalorder %s198, 63
      %s202 = scalar_select %p201, %s198, 63
      %s203 = smul.addr %s200, 64
      %s204 = sadd.s32 %s202, %s203
      %s205 = smul.addr %s204, 4
      %s206 = scalar_lea.vmem %s0, %s205
      %p207 = pneg %p51
      %p208 = pneg %p48
      %p209 = pneg %p72
      %p210 = pneg %p69
      %p211 = pneg %p100
      %p212 = pneg %p97
      %s213 = smul.u32 64, %s21
      %p214 = scmp.lt.s32.totalorder %s20, 1
      %s215 = scalar_select %p214, %s20, 1
      %p216 = scmp.lt.s32.totalorder %s213, 63
      %s217 = scalar_select %p216, %s213, 63
      %s218 = smul.addr %s215, 64
      %s219 = sadd.s32 %s217, %s218
      %s220 = smul.addr %s219, 4
      %s221 = scalar_lea.vmem %s2, %s220
      %p222 = pneg %p128
      %p223 = pneg %p125
      %p224 = scmp.lt.s32.totalorder %s20, 1
      %s225 = scalar_select %p224, %s20, 1
      %p226 = scmp.lt.s32.totalorder %s21, 0
      %s227 = scalar_select %p226, %s21, 0
      %s228 = sadd.s32 %s227, %s225
      %s229 = scalar_lea.vmem %s3, %s228
      %p230 = pneg %p156
      %p231 = pneg %p153
      %p232 = scmp.lt.s32.totalorder %s20, 1
      %s233 = scalar_select %p232, %s20, 1
      %p234 = scmp.lt.s32.totalorder %s21, 0
      %s235 = scalar_select %p234, %s21, 0
      %s236 = sadd.s32 %s235, %s233
      %s237 = scalar_lea.vmem %s4, %s236
      %s238 = smul.u32 64, %s21
      %p239 = scmp.lt.s32.totalorder %s20, 1
      %s240 = scalar_select %p239, %s20, 1
      %p241 = scmp.lt.s32.totalorder %s238, 63
      %s242 = scalar_select %p241, %s238, 63
      %s243 = smul.addr %s240, 64
      %s244 = sadd.s32 %s242, %s243
      %s245 = smul.addr %s244, 4
      %s246 = scalar_lea.vmem %s0, %s245
      %s247 = smul.u32 64, %s21
      %s248 = smul.u32 64, %s21
      %p249 = scmp.lt.s32.totalorder %s20, 1
      %s250 = scalar_select %p249, %s20, 1
      %p251 = scmp.lt.s32.totalorder %s248, 63
      %s252 = scalar_select %p251, %s248, 63
      %s253 = smul.addr %s250, 64
      %s254 = sadd.s32 %s252, %s253
      %s255 = smul.addr %s254, 4
      %s256 = scalar_lea.vmem %s2, %s255
      %s257 = smul.u32 64, %s21
      %p258 = scmp.lt.s32.totalorder %s20, 1
      %s259 = scalar_select %p258, %s20, 1
      %p260 = scmp.lt.s32.totalorder %s21, 0
      %s261 = scalar_select %p260, %s21, 0
      %s262 = sadd.s32 %s261, %s259
      %s263 = scalar_lea.vmem %s3, %s262
      %p264 = scmp.lt.s32.totalorder %s20, 1
      %s265 = scalar_select %p264, %s20, 1
      %p266 = scmp.lt.s32.totalorder %s21, 0
      %s267 = scalar_select %p266, %s21, 0
      %s268 = sadd.s32 %s267, %s265
      %s269 = scalar_lea.vmem %s4, %s268
      %v271 = vld [vmem:[%s246] sm:$0xf]
      %v272 = vld [vmem:[%s246 + $0x4] sm:$0xf]
      %v273 = vld [vmem:[%s246 + $0x8] sm:$0xf]
      %v274 = vld [vmem:[%s246 + $0xc] sm:$0xf]
      %v275 = vld [vmem:[%s246 + $0x10] sm:$0xf]
      %v276 = vld [vmem:[%s246 + $0x14] sm:$0xf]
      %v277 = vld [vmem:[%s246 + $0x18] sm:$0xf]
      %v278 = vld [vmem:[%s246 + $0x1c] sm:$0xf]
      %v279 = vld [vmem:[%s246 + $0x20] sm:$0xf]
      %v280 = vld [vmem:[%s246 + $0x24] sm:$0xf]
      %v281 = vld [vmem:[%s246 + $0x28] sm:$0xf]
      %v282 = vld [vmem:[%s246 + $0x2c] sm:$0xf]
      %v283 = vld [vmem:[%s246 + $0x30] sm:$0xf]
      %v284 = vld [vmem:[%s246 + $0x34] sm:$0xf]
      %v285 = vld [vmem:[%s246 + $0x38] sm:$0xf]
      %v286 = vld [vmem:[%s246 + $0x3c] sm:$0xf]
      %v287 = vld [vmem:[%s246 + $0x40] sm:$0xf]
      %v288 = vld [vmem:[%s246 + $0x44] sm:$0xf]
      %v289 = vld [vmem:[%s246 + $0x48] sm:$0xf]
      %v290 = vld [vmem:[%s246 + $0x4c] sm:$0xf]
      %v291 = vld [vmem:[%s246 + $0x50] sm:$0xf]
      %v292 = vld [vmem:[%s246 + $0x54] sm:$0xf]
      %v293 = vld [vmem:[%s246 + $0x58] sm:$0xf]
      %v294 = vld [vmem:[%s246 + $0x5c] sm:$0xf]
      %v295 = vld [vmem:[%s246 + $0x60] sm:$0xf]
      %v296 = vld [vmem:[%s246 + $0x64] sm:$0xf]
      %v297 = vld [vmem:[%s246 + $0x68] sm:$0xf]
      %v298 = vld [vmem:[%s246 + $0x6c] sm:$0xf]
      %v299 = vld [vmem:[%s246 + $0x70] sm:$0xf]
      %v300 = vld [vmem:[%s246 + $0x74] sm:$0xf]
      %v301 = vld [vmem:[%s246 + $0x78] sm:$0xf]
      %v302 = vld [vmem:[%s246 + $0x7c] sm:$0xf]
      %v303 = vld [vmem:[%s246 + $0x80] sm:$0xf]
      %v304 = vld [vmem:[%s246 + $0x84] sm:$0xf]
      %v305 = vld [vmem:[%s246 + $0x88] sm:$0xf]
      %v306 = vld [vmem:[%s246 + $0x8c] sm:$0xf]
      %v307 = vld [vmem:[%s246 + $0x90] sm:$0xf]
      %v308 = vld [vmem:[%s246 + $0x94] sm:$0xf]
      %v309 = vld [vmem:[%s246 + $0x98] sm:$0xf]
      %v310 = vld [vmem:[%s246 + $0x9c] sm:$0xf]
      %v311 = vld [vmem:[%s246 + $0xa0] sm:$0xf]
      %v312 = vld [vmem:[%s246 + $0xa4] sm:$0xf]
      %v313 = vld [vmem:[%s246 + $0xa8] sm:$0xf]
      %v314 = vld [vmem:[%s246 + $0xac] sm:$0xf]
      %v315 = vld [vmem:[%s246 + $0xb0] sm:$0xf]
      %v316 = vld [vmem:[%s246 + $0xb4] sm:$0xf]
      %v317 = vld [vmem:[%s246 + $0xb8] sm:$0xf]
      %v318 = vld [vmem:[%s246 + $0xbc] sm:$0xf]
      %v319 = vld [vmem:[%s246 + $0xc0] sm:$0xf]
      %v320 = vld [vmem:[%s246 + $0xc4] sm:$0xf]
      %v321 = vld [vmem:[%s246 + $0xc8] sm:$0xf]
      %v322 = vld [vmem:[%s246 + $0xcc] sm:$0xf]
      %v323 = vld [vmem:[%s246 + $0xd0] sm:$0xf]
      %v324 = vld [vmem:[%s246 + $0xd4] sm:$0xf]
      %v325 = vld [vmem:[%s246 + $0xd8] sm:$0xf]
      %v326 = vld [vmem:[%s246 + $0xdc] sm:$0xf]
      %v327 = vld [vmem:[%s246 + $0xe0] sm:$0xf]
      %v328 = vld [vmem:[%s246 + $0xe4] sm:$0xf]
      %v329 = vld [vmem:[%s246 + $0xe8] sm:$0xf]
      %v330 = vld [vmem:[%s246 + $0xec] sm:$0xf]
      %v331 = vld [vmem:[%s246 + $0xf0] sm:$0xf]
      %v332 = vld [vmem:[%s246 + $0xf4] sm:$0xf]
      %v333 = vld [vmem:[%s246 + $0xf8] sm:$0xf]
      %v334 = vld [vmem:[%s246 + $0xfc] sm:$0xf]
      %v335 = vld [vmem:[%s1] sm:$0xf]
      %v336 = vld [vmem:[%s1 + $0x4] sm:$0xf]
      %v337 = vld [vmem:[%s1 + $0x8] sm:$0xf]
      %v338 = vld [vmem:[%s1 + $0xc] sm:$0xf]
      %v403 = vunpack.c.l.b16 %v271
      %v404 = vunpack.c.l.b16 %v272
      %v405 = vunpack.c.l.b16 %v273
      %v406 = vunpack.c.l.b16 %v274
      %v407 = vunpack.c.l.b16 %v275
      %v408 = vunpack.c.l.b16 %v276
      %v409 = vunpack.c.l.b16 %v277
      %v410 = vunpack.c.l.b16 %v278
      %v411 = vunpack.c.l.b16 %v279
      %v412 = vunpack.c.l.b16 %v280
      %v413 = vunpack.c.l.b16 %v281
      %v414 = vunpack.c.l.b16 %v282
      %v415 = vunpack.c.l.b16 %v283
      %v416 = vunpack.c.l.b16 %v284
      %v417 = vunpack.c.l.b16 %v285
      %v418 = vunpack.c.l.b16 %v286
      %v419 = vunpack.c.l.b16 %v287
      %v420 = vunpack.c.l.b16 %v288
      %v421 = vunpack.c.l.b16 %v289
      %v422 = vunpack.c.l.b16 %v290
      %v423 = vunpack.c.l.b16 %v291
      %v424 = vunpack.c.l.b16 %v292
      %v425 = vunpack.c.l.b16 %v293
      %v426 = vunpack.c.l.b16 %v294
      %v427 = vunpack.c.l.b16 %v295
      %v428 = vunpack.c.l.b16 %v296
      %v429 = vunpack.c.l.b16 %v297
      %v430 = vunpack.c.l.b16 %v298
      %v431 = vunpack.c.l.b16 %v299
      %v432 = vunpack.c.l.b16 %v300
      %v433 = vunpack.c.l.b16 %v301
      %v434 = vunpack.c.l.b16 %v302
      %v435 = vunpack.c.l.b16 %v303
      %v436 = vunpack.c.l.b16 %v304
      %v437 = vunpack.c.l.b16 %v305
      %v438 = vunpack.c.l.b16 %v306
      %v439 = vunpack.c.l.b16 %v307
      %v440 = vunpack.c.l.b16 %v308
      %v441 = vunpack.c.l.b16 %v309
      %v442 = vunpack.c.l.b16 %v310
      %v443 = vunpack.c.l.b16 %v311
      %v444 = vunpack.c.l.b16 %v312
      %v445 = vunpack.c.l.b16 %v313
      %v446 = vunpack.c.l.b16 %v314
      %v447 = vunpack.c.l.b16 %v315
      %v448 = vunpack.c.l.b16 %v316
      %v449 = vunpack.c.l.b16 %v317
      %v450 = vunpack.c.l.b16 %v318
      %v451 = vunpack.c.l.b16 %v319
      %v452 = vunpack.c.l.b16 %v320
      %v453 = vunpack.c.l.b16 %v321
      %v454 = vunpack.c.l.b16 %v322
      %v455 = vunpack.c.l.b16 %v323
      %v456 = vunpack.c.l.b16 %v324
      %v457 = vunpack.c.l.b16 %v325
      %v458 = vunpack.c.l.b16 %v326
      %v459 = vunpack.c.l.b16 %v327
      %v460 = vunpack.c.l.b16 %v328
      %v461 = vunpack.c.l.b16 %v329
      %v462 = vunpack.c.l.b16 %v330
      %v463 = vunpack.c.l.b16 %v331
      %v464 = vunpack.c.l.b16 %v332
      %v465 = vunpack.c.l.b16 %v333
      %v466 = vunpack.c.l.b16 %v334
      %v467 = vpack.c.b16 %v404, %v403
      %v468 = vpack.c.b16 %v406, %v405
      %v469 = vpack.c.b16 %v408, %v407
      %v470 = vpack.c.b16 %v410, %v409
      %v471 = vpack.c.b16 %v412, %v411
      %v472 = vpack.c.b16 %v414, %v413
      %v473 = vpack.c.b16 %v416, %v415
      %v474 = vpack.c.b16 %v418, %v417
      %v475 = vpack.c.b16 %v420, %v419
      %v476 = vpack.c.b16 %v422, %v421
      %v477 = vpack.c.b16 %v424, %v423
      %v478 = vpack.c.b16 %v426, %v425
      %v479 = vpack.c.b16 %v428, %v427
      %v480 = vpack.c.b16 %v430, %v429
      %v481 = vpack.c.b16 %v432, %v431
      %v482 = vpack.c.b16 %v434, %v433
      %v483 = vpack.c.b16 %v436, %v435
      %v484 = vpack.c.b16 %v438, %v437
      %v485 = vpack.c.b16 %v440, %v439
      %v486 = vpack.c.b16 %v442, %v441
      %v487 = vpack.c.b16 %v444, %v443
      %v488 = vpack.c.b16 %v446, %v445
      %v489 = vpack.c.b16 %v448, %v447
      %v490 = vpack.c.b16 %v450, %v449
      %v491 = vpack.c.b16 %v452, %v451
      %v492 = vpack.c.b16 %v454, %v453
      %v493 = vpack.c.b16 %v456, %v455
      %v494 = vpack.c.b16 %v458, %v457
      %v495 = vpack.c.b16 %v460, %v459
      %v496 = vpack.c.b16 %v462, %v461
      %v497 = vpack.c.b16 %v464, %v463
      %v498 = vpack.c.b16 %v466, %v465
      %v503 = vunpack.c.l.b16 %v335
      %v504 = vunpack.c.l.b16 %v336
      %v505 = vunpack.c.l.b16 %v337
      %v506 = vunpack.c.l.b16 %v338
      %v507 = vpack.c.b16 %v504, %v503
      %v508 = vpack.c.b16 %v506, %v505
      %vm511 = vcmask 261120
      %v513 = vsel %vm511, %v467, 0
      %v516 = vsel %vm511, %v468, 0
      %v519 = vsel %vm511, %v469, 0
      %v522 = vsel %vm511, %v470, 0
      %v525 = vsel %vm511, %v471, 0
      %v528 = vsel %vm511, %v472, 0
      %v531 = vsel %vm511, %v473, 0
      %v534 = vsel %vm511, %v474, 0
      %v537 = vsel %vm511, %v475, 0
      %v540 = vsel %vm511, %v476, 0
      %v543 = vsel %vm511, %v477, 0
      %v546 = vsel %vm511, %v478, 0
      %v549 = vsel %vm511, %v479, 0
      %v552 = vsel %vm511, %v480, 0
      %v555 = vsel %vm511, %v481, 0
      %v558 = vsel %vm511, %v482, 0
      %v561 = vsel %vm511, %v483, 0
      %v564 = vsel %vm511, %v484, 0
      %v567 = vsel %vm511, %v485, 0
      %v570 = vsel %vm511, %v486, 0
      %v573 = vsel %vm511, %v487, 0
      %v576 = vsel %vm511, %v488, 0
      %v579 = vsel %vm511, %v489, 0
      %v582 = vsel %vm511, %v490, 0
      %v585 = vsel %vm511, %v491, 0
      %v588 = vsel %vm511, %v492, 0
      %v591 = vsel %vm511, %v493, 0
      %v594 = vsel %vm511, %v494, 0
      %v597 = vsel %vm511, %v495, 0
      %v600 = vsel %vm511, %v496, 0
      %v603 = vsel %vm511, %v497, 0
      %v606 = vsel %vm511, %v498, 0
      %608 = vmatprep.subr.bf16.mxu0 0
      %609 = vmatpush1.bf16.msra.mxu0 0
      %610 = vmatprep.subr.bf16.mxu0 0
      %611 = vmatpush1.bf16.msra.mxu0 0
      %612 = vmatprep.subr.bf16.mxu0 0
      %613 = vmatpush1.bf16.msra.mxu0 0
      %614 = vmatprep.subr.bf16.mxu0 0
      %615 = vmatpush1.bf16.msra.mxu0 0
      %616 = vmatprep.subr.bf16.mxu0 0
      %617 = vmatpush1.bf16.msra.mxu0 0
      %618 = vmatprep.subr.bf16.mxu0 0
      %619 = vmatpush1.bf16.msra.mxu0 0
      %620 = vmatprep.subr.bf16.mxu0 0
      %621 = vmatpush1.bf16.msra.mxu0 %v508
      %622 = vmatprep.subr.bf16.mxu0 0
      %623 = vmatpush1.bf16.msra.mxu0 %v507
      %624 = vmatprep.subr.bf16.mxu0 0
      %625 = vmatpush2.bf16.msra.mxu0 0
      %626 = vmatprep.subr.bf16.mxu0 0
      %627 = vmatpush2.bf16.msra.mxu0 0
      %628 = vmatprep.subr.bf16.mxu0 0
      %629 = vmatpush2.bf16.msra.mxu0 0
      %630 = vmatprep.subr.bf16.mxu0 0
      %631 = vmatpush2.bf16.msra.mxu0 0
      %632 = vmatprep.subr.bf16.mxu0 0
      %633 = vmatpush2.bf16.msra.mxu0 0
      %634 = vmatprep.subr.bf16.mxu0 0
      %635 = vmatpush2.bf16.msra.mxu0 0
      %636 = vmatprep.subr.bf16.mxu0 0
      %637 = vmatpush2.bf16.msra.mxu0 0
      %638 = vmatprep.subr.bf16.mxu0 0
      %639 = vmatpush2.bf16.msra.mxu0 0
      %640 = vmatprep.mubr.bf16.mxu0 0
      %641 = vmatmul.mubr.bf16.gmra.mxu0 %v513
      %v642 = vpop.f32.mrf.mxu0
      %v643 = vadd.f32 0.0, %v642
      %v644 = vpop.f32.mrf.mxu0
      %v645 = vpop.f32.mrf.mxu0
      %v646 = vadd.f32 0.0, %v645
      %v647 = vpop.f32.mrf.mxu0
      %648 = vmatprep.mubr.bf16.mxu0 0
      %649 = vmatmul.mubr.bf16.gmra.mxu0 %v516
      %v650 = vpop.f32.mrf.mxu0
      %v651 = vadd.f32 0.0, %v650
      %v652 = vpop.f32.mrf.mxu0
      %v653 = vpop.f32.mrf.mxu0
      %v654 = vadd.f32 0.0, %v653
      %v655 = vpop.f32.mrf.mxu0
      %656 = vmatprep.mubr.bf16.mxu0 0
      %657 = vmatmul.mubr.bf16.gmra.mxu0 %v519
      %v658 = vpop.f32.mrf.mxu0
      %v659 = vadd.f32 0.0, %v658
      %v660 = vpop.f32.mrf.mxu0
      %v661 = vpop.f32.mrf.mxu0
      %v662 = vadd.f32 0.0, %v661
      %v663 = vpop.f32.mrf.mxu0
      %664 = vmatprep.mubr.bf16.mxu0 0
      %665 = vmatmul.mubr.bf16.gmra.mxu0 %v522
      %v666 = vpop.f32.mrf.mxu0
      %v667 = vadd.f32 0.0, %v666
      %v668 = vpop.f32.mrf.mxu0
      %v669 = vpop.f32.mrf.mxu0
      %v670 = vadd.f32 0.0, %v669
      %v671 = vpop.f32.mrf.mxu0
      %672 = vmatprep.mubr.bf16.mxu0 0
      %673 = vmatmul.mubr.bf16.gmra.mxu0 %v525
      %v674 = vpop.f32.mrf.mxu0
      %v675 = vadd.f32 0.0, %v674
      %v676 = vpop.f32.mrf.mxu0
      %v677 = vpop.f32.mrf.mxu0
      %v678 = vadd.f32 0.0, %v677
      %v679 = vpop.f32.mrf.mxu0
      %680 = vmatprep.mubr.bf16.mxu0 0
      %681 = vmatmul.mubr.bf16.gmra.mxu0 %v528
      %v682 = vpop.f32.mrf.mxu0
      %v683 = vadd.f32 0.0, %v682
      %v684 = vpop.f32.mrf.mxu0
      %v685 = vpop.f32.mrf.mxu0
      %v686 = vadd.f32 0.0, %v685
      %v687 = vpop.f32.mrf.mxu0
      %688 = vmatprep.mubr.bf16.mxu0 0
      %689 = vmatmul.mubr.bf16.gmra.mxu0 %v531
      %v690 = vpop.f32.mrf.mxu0
      %v691 = vadd.f32 0.0, %v690
      %v692 = vpop.f32.mrf.mxu0
      %v693 = vpop.f32.mrf.mxu0
      %v694 = vadd.f32 0.0, %v693
      %v695 = vpop.f32.mrf.mxu0
      %696 = vmatprep.mubr.bf16.mxu0 0
      %697 = vmatmul.mubr.bf16.gmra.mxu0 %v534
      %v698 = vpop.f32.mrf.mxu0
      %v699 = vadd.f32 0.0, %v698
      %v700 = vpop.f32.mrf.mxu0
      %v701 = vpop.f32.mrf.mxu0
      %v702 = vadd.f32 0.0, %v701
      %v703 = vpop.f32.mrf.mxu0
      %704 = vmatprep.mubr.bf16.mxu0 0
      %705 = vmatmul.mubr.bf16.gmra.mxu0 %v537
      %v706 = vpop.f32.mrf.mxu0
      %v707 = vadd.f32 0.0, %v706
      %v708 = vpop.f32.mrf.mxu0
      %v709 = vpop.f32.mrf.mxu0
      %v710 = vadd.f32 0.0, %v709
      %v711 = vpop.f32.mrf.mxu0
      %712 = vmatprep.mubr.bf16.mxu0 0
      %713 = vmatmul.mubr.bf16.gmra.mxu0 %v540
      %v714 = vpop.f32.mrf.mxu0
      %v715 = vadd.f32 0.0, %v714
      %v716 = vpop.f32.mrf.mxu0
      %v717 = vpop.f32.mrf.mxu0
      %v718 = vadd.f32 0.0, %v717
      %v719 = vpop.f32.mrf.mxu0
      %720 = vmatprep.mubr.bf16.mxu0 0
      %721 = vmatmul.mubr.bf16.gmra.mxu0 %v543
      %v722 = vpop.f32.mrf.mxu0
      %v723 = vadd.f32 0.0, %v722
      %v724 = vpop.f32.mrf.mxu0
      %v725 = vpop.f32.mrf.mxu0
      %v726 = vadd.f32 0.0, %v725
      %v727 = vpop.f32.mrf.mxu0
      %728 = vmatprep.mubr.bf16.mxu0 0
      %729 = vmatmul.mubr.bf16.gmra.mxu0 %v546
      %v730 = vpop.f32.mrf.mxu0
      %v731 = vadd.f32 0.0, %v730
      %v732 = vpop.f32.mrf.mxu0
      %v733 = vpop.f32.mrf.mxu0
      %v734 = vadd.f32 0.0, %v733
      %v735 = vpop.f32.mrf.mxu0
      %736 = vmatprep.mubr.bf16.mxu0 0
      %737 = vmatmul.mubr.bf16.gmra.mxu0 %v549
      %v738 = vpop.f32.mrf.mxu0
      %v739 = vadd.f32 0.0, %v738
      %v740 = vpop.f32.mrf.mxu0
      %v741 = vpop.f32.mrf.mxu0
      %v742 = vadd.f32 0.0, %v741
      %v743 = vpop.f32.mrf.mxu0
      %744 = vmatprep.mubr.bf16.mxu0 0
      %745 = vmatmul.mubr.bf16.gmra.mxu0 %v552
      %v746 = vpop.f32.mrf.mxu0
      %v747 = vadd.f32 0.0, %v746
      %v748 = vpop.f32.mrf.mxu0
      %v749 = vpop.f32.mrf.mxu0
      %v750 = vadd.f32 0.0, %v749
      %v751 = vpop.f32.mrf.mxu0
      %752 = vmatprep.mubr.bf16.mxu0 0
      %753 = vmatmul.mubr.bf16.gmra.mxu0 %v555
      %v754 = vpop.f32.mrf.mxu0
      %v755 = vadd.f32 0.0, %v754
      %v756 = vpop.f32.mrf.mxu0
      %v757 = vpop.f32.mrf.mxu0
      %v758 = vadd.f32 0.0, %v757
      %v759 = vpop.f32.mrf.mxu0
      %760 = vmatprep.mubr.bf16.mxu0 0
      %761 = vmatmul.mubr.bf16.gmra.mxu0 %v558
      %v762 = vpop.f32.mrf.mxu0
      %v763 = vadd.f32 0.0, %v762
      %v764 = vpop.f32.mrf.mxu0
      %v765 = vpop.f32.mrf.mxu0
      %v766 = vadd.f32 0.0, %v765
      %v767 = vpop.f32.mrf.mxu0
      %768 = vmatprep.mubr.bf16.mxu0 0
      %769 = vmatmul.mubr.bf16.gmra.mxu0 %v561
      %v770 = vpop.f32.mrf.mxu0
      %v771 = vadd.f32 0.0, %v770
      %v772 = vpop.f32.mrf.mxu0
      %v773 = vpop.f32.mrf.mxu0
      %v774 = vadd.f32 0.0, %v773
      %v775 = vpop.f32.mrf.mxu0
      %776 = vmatprep.mubr.bf16.mxu0 0
      %777 = vmatmul.mubr.bf16.gmra.mxu0 %v564
      %v778 = vpop.f32.mrf.mxu0
      %v779 = vadd.f32 0.0, %v778
      %v780 = vpop.f32.mrf.mxu0
      %v781 = vpop.f32.mrf.mxu0
      %v782 = vadd.f32 0.0, %v781
      %v783 = vpop.f32.mrf.mxu0
      %784 = vmatprep.mubr.bf16.mxu0 0
      %785 = vmatmul.mubr.bf16.gmra.mxu0 %v567
      %v786 = vpop.f32.mrf.mxu0
      %v787 = vadd.f32 0.0, %v786
      %v788 = vpop.f32.mrf.mxu0
      %v789 = vpop.f32.mrf.mxu0
      %v790 = vadd.f32 0.0, %v789
      %v791 = vpop.f32.mrf.mxu0
      %792 = vmatprep.mubr.bf16.mxu0 0
      %793 = vmatmul.mubr.bf16.gmra.mxu0 %v570
      %v794 = vpop.f32.mrf.mxu0
      %v795 = vadd.f32 0.0, %v794
      %v796 = vpop.f32.mrf.mxu0
      %v797 = vpop.f32.mrf.mxu0
      %v798 = vadd.f32 0.0, %v797
      %v799 = vpop.f32.mrf.mxu0
      %800 = vmatprep.mubr.bf16.mxu0 0
      %801 = vmatmul.mubr.bf16.gmra.mxu0 %v573
      %v802 = vpop.f32.mrf.mxu0
      %v803 = vadd.f32 0.0, %v802
      %v804 = vpop.f32.mrf.mxu0
      %v805 = vpop.f32.mrf.mxu0
      %v806 = vadd.f32 0.0, %v805
      %v807 = vpop.f32.mrf.mxu0
      %808 = vmatprep.mubr.bf16.mxu0 0
      %809 = vmatmul.mubr.bf16.gmra.mxu0 %v576
      %v810 = vpop.f32.mrf.mxu0
      %v811 = vadd.f32 0.0, %v810
      %v812 = vpop.f32.mrf.mxu0
      %v813 = vpop.f32.mrf.mxu0
      %v814 = vadd.f32 0.0, %v813
      %v815 = vpop.f32.mrf.mxu0
      %816 = vmatprep.mubr.bf16.mxu0 0
      %817 = vmatmul.mubr.bf16.gmra.mxu0 %v579
      %v818 = vpop.f32.mrf.mxu0
      %v819 = vadd.f32 0.0, %v818
      %v820 = vpop.f32.mrf.mxu0
      %v821 = vpop.f32.mrf.mxu0
      %v822 = vadd.f32 0.0, %v821
      %v823 = vpop.f32.mrf.mxu0
      %824 = vmatprep.mubr.bf16.mxu0 0
      %825 = vmatmul.mubr.bf16.gmra.mxu0 %v582
      %v826 = vpop.f32.mrf.mxu0
      %v827 = vadd.f32 0.0, %v826
      %v828 = vpop.f32.mrf.mxu0
      %v829 = vpop.f32.mrf.mxu0
      %v830 = vadd.f32 0.0, %v829
      %v831 = vpop.f32.mrf.mxu0
      %832 = vmatprep.mubr.bf16.mxu0 0
      %833 = vmatmul.mubr.bf16.gmra.mxu0 %v585
      %v834 = vpop.f32.mrf.mxu0
      %v835 = vadd.f32 0.0, %v834
      %v836 = vpop.f32.mrf.mxu0
      %v837 = vpop.f32.mrf.mxu0
      %v838 = vadd.f32 0.0, %v837
      %v839 = vpop.f32.mrf.mxu0
      %840 = vmatprep.mubr.bf16.mxu0 0
      %841 = vmatmul.mubr.bf16.gmra.mxu0 %v588
      %v842 = vpop.f32.mrf.mxu0
      %v843 = vadd.f32 0.0, %v842
      %v844 = vpop.f32.mrf.mxu0
      %v845 = vpop.f32.mrf.mxu0
      %v846 = vadd.f32 0.0, %v845
      %v847 = vpop.f32.mrf.mxu0
      %848 = vmatprep.mubr.bf16.mxu0 0
      %849 = vmatmul.mubr.bf16.gmra.mxu0 %v591
      %v850 = vpop.f32.mrf.mxu0
      %v851 = vadd.f32 0.0, %v850
      %v852 = vpop.f32.mrf.mxu0
      %v853 = vpop.f32.mrf.mxu0
      %v854 = vadd.f32 0.0, %v853
      %v855 = vpop.f32.mrf.mxu0
      %856 = vmatprep.mubr.bf16.mxu0 0
      %857 = vmatmul.mubr.bf16.gmra.mxu0 %v594
      %v858 = vpop.f32.mrf.mxu0
      %v859 = vadd.f32 0.0, %v858
      %v860 = vpop.f32.mrf.mxu0
      %v861 = vpop.f32.mrf.mxu0
      %v862 = vadd.f32 0.0, %v861
      %v863 = vpop.f32.mrf.mxu0
      %864 = vmatprep.mubr.bf16.mxu0 0
      %865 = vmatmul.mubr.bf16.gmra.mxu0 %v597
      %v866 = vpop.f32.mrf.mxu0
      %v867 = vadd.f32 0.0, %v866
      %v868 = vpop.f32.mrf.mxu0
      %v869 = vpop.f32.mrf.mxu0
      %v870 = vadd.f32 0.0, %v869
      %v871 = vpop.f32.mrf.mxu0
      %872 = vmatprep.mubr.bf16.mxu0 0
      %873 = vmatmul.mubr.bf16.gmra.mxu0 %v600
      %v874 = vpop.f32.mrf.mxu0
      %v875 = vadd.f32 0.0, %v874
      %v876 = vpop.f32.mrf.mxu0
      %v877 = vpop.f32.mrf.mxu0
      %v878 = vadd.f32 0.0, %v877
      %v879 = vpop.f32.mrf.mxu0
      %880 = vmatprep.mubr.bf16.mxu0 0
      %881 = vmatmul.mubr.bf16.gmra.mxu0 %v603
      %v882 = vpop.f32.mrf.mxu0
      %v883 = vadd.f32 0.0, %v882
      %v884 = vpop.f32.mrf.mxu0
      %v885 = vpop.f32.mrf.mxu0
      %v886 = vadd.f32 0.0, %v885
      %v887 = vpop.f32.mrf.mxu0
      %888 = vmatprep.mubr.bf16.mxu0 0
      %889 = vmatmul.mubr.bf16.gmra.mxu0 %v606
      %v890 = vpop.f32.mrf.mxu0
      %v891 = vadd.f32 0.0, %v890
      %v892 = vpop.f32.mrf.mxu0
      %v893 = vpop.f32.mrf.mxu0
      %v894 = vadd.f32 0.0, %v893
      %v895 = vpop.f32.mrf.mxu0
      %896 = vdwg.mxu0
      %v897 = vadd.f32 %v643, %v646
      %v898 = vadd.f32 %v897, %v651
      %v899 = vadd.f32 %v898, %v654
      %v900 = vadd.f32 %v899, %v659
      %v901 = vadd.f32 %v900, %v662
      %v902 = vadd.f32 %v901, %v667
      %v903 = vadd.f32 %v902, %v670
      %v904 = vadd.f32 %v903, %v675
      %v905 = vadd.f32 %v904, %v678
      %v906 = vadd.f32 %v905, %v683
      %v907 = vadd.f32 %v906, %v686
      %v908 = vadd.f32 %v907, %v691
      %v909 = vadd.f32 %v908, %v694
      %v910 = vadd.f32 %v909, %v699
      %v911 = vadd.f32 %v910, %v702
      %v912 = vadd.f32 %v911, %v707
      %v913 = vadd.f32 %v912, %v710
      %v914 = vadd.f32 %v913, %v715
      %v915 = vadd.f32 %v914, %v718
      %v916 = vadd.f32 %v915, %v723
      %v917 = vadd.f32 %v916, %v726
      %v918 = vadd.f32 %v917, %v731
      %v919 = vadd.f32 %v918, %v734
      %v920 = vadd.f32 %v919, %v739
      %v921 = vadd.f32 %v920, %v742
      %v922 = vadd.f32 %v921, %v747
      %v923 = vadd.f32 %v922, %v750
      %v924 = vadd.f32 %v923, %v755
      %v925 = vadd.f32 %v924, %v758
      %v926 = vadd.f32 %v925, %v763
      %v927 = vadd.f32 %v926, %v766
      %v928 = vadd.f32 %v927, %v771
      %v929 = vadd.f32 %v928, %v774
      %v930 = vadd.f32 %v929, %v779
      %v931 = vadd.f32 %v930, %v782
      %v932 = vadd.f32 %v931, %v787
      %v933 = vadd.f32 %v932, %v790
      %v934 = vadd.f32 %v933, %v795
      %v935 = vadd.f32 %v934, %v798
      %v936 = vadd.f32 %v935, %v803
      %v937 = vadd.f32 %v936, %v806
      %v938 = vadd.f32 %v937, %v811
      %v939 = vadd.f32 %v938, %v814
      %v940 = vadd.f32 %v939, %v819
      %v941 = vadd.f32 %v940, %v822
      %v942 = vadd.f32 %v941, %v827
      %v943 = vadd.f32 %v942, %v830
      %v944 = vadd.f32 %v943, %v835
      %v945 = vadd.f32 %v944, %v838
      %v946 = vadd.f32 %v945, %v843
      %v947 = vadd.f32 %v946, %v846
      %v948 = vadd.f32 %v947, %v851
      %v949 = vadd.f32 %v948, %v854
      %v950 = vadd.f32 %v949, %v859
      %v951 = vadd.f32 %v950, %v862
      %v952 = vadd.f32 %v951, %v867
      %v953 = vadd.f32 %v952, %v870
      %v954 = vadd.f32 %v953, %v875
      %v955 = vadd.f32 %v954, %v878
      %v956 = vadd.f32 %v955, %v883
      %v957 = vadd.f32 %v956, %v886
      %v958 = vadd.f32 %v957, %v891
      %v959 = vadd.f32 %v958, %v894
      %v960 = vrot.slane %v959, 4
      %v961 = vadd.f32 %v959, %v960
      %v962 = vrot.slane %v961, 2
      %v963 = vadd.f32 %v961, %v962
      %v964 = vrot.slane %v963, 1
      %v965 = vadd.f32 %v963, %v964
      %966 = vst [vmem:[%s263] sm:$0x1] %v965
      %v967 = vmul.f32 %v643, %v643
      %v968 = vmul.f32 %v646, %v646
      %v969 = vmul.f32 %v651, %v651
      %v970 = vmul.f32 %v654, %v654
      %v971 = vmul.f32 %v659, %v659
      %v972 = vmul.f32 %v662, %v662
      %v973 = vmul.f32 %v667, %v667
      %v974 = vmul.f32 %v670, %v670
      %v975 = vmul.f32 %v675, %v675
      %v976 = vmul.f32 %v678, %v678
      %v977 = vmul.f32 %v683, %v683
      %v978 = vmul.f32 %v686, %v686
      %v979 = vmul.f32 %v691, %v691
      %v980 = vmul.f32 %v694, %v694
      %v981 = vmul.f32 %v699, %v699
      %v982 = vmul.f32 %v702, %v702
      %v983 = vmul.f32 %v707, %v707
      %v984 = vmul.f32 %v710, %v710
      %v985 = vmul.f32 %v715, %v715
      %v986 = vmul.f32 %v718, %v718
      %v987 = vmul.f32 %v723, %v723
      %v988 = vmul.f32 %v726, %v726
      %v989 = vmul.f32 %v731, %v731
      %v990 = vmul.f32 %v734, %v734
      %v991 = vmul.f32 %v739, %v739
      %v992 = vmul.f32 %v742, %v742
      %v993 = vmul.f32 %v747, %v747
      %v994 = vmul.f32 %v750, %v750
      %v995 = vmul.f32 %v755, %v755
      %v996 = vmul.f32 %v758, %v758
      %v997 = vmul.f32 %v763, %v763
      %v998 = vmul.f32 %v766, %v766
      %v999 = vmul.f32 %v771, %v771
      %v1000 = vmul.f32 %v774, %v774
      %v1001 = vmul.f32 %v779, %v779
      %v1002 = vmul.f32 %v782, %v782
      %v1003 = vmul.f32 %v787, %v787
      %v1004 = vmul.f32 %v790, %v790
      %v1005 = vmul.f32 %v795, %v795
      %v1006 = vmul.f32 %v798, %v798
      %v1007 = vmul.f32 %v803, %v803
      %v1008 = vmul.f32 %v806, %v806
      %v1009 = vmul.f32 %v811, %v811
      %v1010 = vmul.f32 %v814, %v814
      %v1011 = vmul.f32 %v819, %v819
      %v1012 = vmul.f32 %v822, %v822
      %v1013 = vmul.f32 %v827, %v827
      %v1014 = vmul.f32 %v830, %v830
      %v1015 = vmul.f32 %v835, %v835
      %v1016 = vmul.f32 %v838, %v838
      %v1017 = vmul.f32 %v843, %v843
      %v1018 = vmul.f32 %v846, %v846
      %v1019 = vmul.f32 %v851, %v851
      %v1020 = vmul.f32 %v854, %v854
      %v1021 = vmul.f32 %v859, %v859
      %v1022 = vmul.f32 %v862, %v862
      %v1023 = vmul.f32 %v867, %v867
      %v1024 = vmul.f32 %v870, %v870
      %v1025 = vmul.f32 %v875, %v875
      %v1026 = vmul.f32 %v878, %v878
      %v1027 = vmul.f32 %v883, %v883
      %v1028 = vmul.f32 %v886, %v886
      %v1029 = vmul.f32 %v891, %v891
      %v1030 = vmul.f32 %v894, %v894
      %v1031 = vadd.f32 %v967, %v968
      %v1032 = vadd.f32 %v1031, %v969
      %v1033 = vadd.f32 %v1032, %v970
      %v1034 = vadd.f32 %v1033, %v971
      %v1035 = vadd.f32 %v1034, %v972
      %v1036 = vadd.f32 %v1035, %v973
      %v1037 = vadd.f32 %v1036, %v974
      %v1038 = vadd.f32 %v1037, %v975
      %v1039 = vadd.f32 %v1038, %v976
      %v1040 = vadd.f32 %v1039, %v977
      %v1041 = vadd.f32 %v1040, %v978
      %v1042 = vadd.f32 %v1041, %v979
      %v1043 = vadd.f32 %v1042, %v980
      %v1044 = vadd.f32 %v1043, %v981
      %v1045 = vadd.f32 %v1044, %v982
      %v1046 = vadd.f32 %v1045, %v983
      %v1047 = vadd.f32 %v1046, %v984
      %v1048 = vadd.f32 %v1047, %v985
      %v1049 = vadd.f32 %v1048, %v986
      %v1050 = vadd.f32 %v1049, %v987
      %v1051 = vadd.f32 %v1050, %v988
      %v1052 = vadd.f32 %v1051, %v989
      %v1053 = vadd.f32 %v1052, %v990
      %v1054 = vadd.f32 %v1053, %v991
      %v1055 = vadd.f32 %v1054, %v992
      %v1056 = vadd.f32 %v1055, %v993
      %v1057 = vadd.f32 %v1056, %v994
      %v1058 = vadd.f32 %v1057, %v995
      %v1059 = vadd.f32 %v1058, %v996
      %v1060 = vadd.f32 %v1059, %v997
      %v1061 = vadd.f32 %v1060, %v998
      %v1062 = vadd.f32 %v1061, %v999
      %v1063 = vadd.f32 %v1062, %v1000
      %v1064 = vadd.f32 %v1063, %v1001
      %v1065 = vadd.f32 %v1064, %v1002
      %v1066 = vadd.f32 %v1065, %v1003
      %v1067 = vadd.f32 %v1066, %v1004
      %v1068 = vadd.f32 %v1067, %v1005
      %v1069 = vadd.f32 %v1068, %v1006
      %v1070 = vadd.f32 %v1069, %v1007
      %v1071 = vadd.f32 %v1070, %v1008
      %v1072 = vadd.f32 %v1071, %v1009
      %v1073 = vadd.f32 %v1072, %v1010
      %v1074 = vadd.f32 %v1073, %v1011
      %v1075 = vadd.f32 %v1074, %v1012
      %v1076 = vadd.f32 %v1075, %v1013
      %v1077 = vadd.f32 %v1076, %v1014
      %v1078 = vadd.f32 %v1077, %v1015
      %v1079 = vadd.f32 %v1078, %v1016
      %v1080 = vadd.f32 %v1079, %v1017
      %v1081 = vadd.f32 %v1080, %v1018
      %v1082 = vadd.f32 %v1081, %v1019
      %v1083 = vadd.f32 %v1082, %v1020
      %v1084 = vadd.f32 %v1083, %v1021
      %v1085 = vadd.f32 %v1084, %v1022
      %v1086 = vadd.f32 %v1085, %v1023
      %v1087 = vadd.f32 %v1086, %v1024
      %v1088 = vadd.f32 %v1087, %v1025
      %v1089 = vadd.f32 %v1088, %v1026
      %v1090 = vadd.f32 %v1089, %v1027
      %v1091 = vadd.f32 %v1090, %v1028
      %v1092 = vadd.f32 %v1091, %v1029
      %v1093 = vadd.f32 %v1092, %v1030
      %v1094 = vrot.slane %v1093, 4
      %v1095 = vadd.f32 %v1093, %v1094
      %v1096 = vrot.slane %v1095, 2
      %v1097 = vadd.f32 %v1095, %v1096
      %v1098 = vrot.slane %v1097, 1
      %v1099 = vadd.f32 %v1097, %v1098
      %1100 = vst [vmem:[%s269] sm:$0x1] %v1099
      %v1101 = vpack.c.bf16 %v646, %v643
      %v1102 = vpack.c.bf16 %v654, %v651
      %v1103 = vpack.c.bf16 %v662, %v659
      %v1104 = vpack.c.bf16 %v670, %v667
      %v1105 = vpack.c.bf16 %v678, %v675
      %v1106 = vpack.c.bf16 %v686, %v683
      %v1107 = vpack.c.bf16 %v694, %v691
      %v1108 = vpack.c.bf16 %v702, %v699
      %v1109 = vpack.c.bf16 %v710, %v707
      %v1110 = vpack.c.bf16 %v718, %v715
      %v1111 = vpack.c.bf16 %v726, %v723
      %v1112 = vpack.c.bf16 %v734, %v731
      %v1113 = vpack.c.bf16 %v742, %v739
      %v1114 = vpack.c.bf16 %v750, %v747
      %v1115 = vpack.c.bf16 %v758, %v755
      %v1116 = vpack.c.bf16 %v766, %v763
      %v1117 = vpack.c.bf16 %v774, %v771
      %v1118 = vpack.c.bf16 %v782, %v779
      %v1119 = vpack.c.bf16 %v790, %v787
      %v1120 = vpack.c.bf16 %v798, %v795
      %v1121 = vpack.c.bf16 %v806, %v803
      %v1122 = vpack.c.bf16 %v814, %v811
      %v1123 = vpack.c.bf16 %v822, %v819
      %v1124 = vpack.c.bf16 %v830, %v827
      %v1125 = vpack.c.bf16 %v838, %v835
      %v1126 = vpack.c.bf16 %v846, %v843
      %v1127 = vpack.c.bf16 %v854, %v851
      %v1128 = vpack.c.bf16 %v862, %v859
      %v1129 = vpack.c.bf16 %v870, %v867
      %v1130 = vpack.c.bf16 %v878, %v875
      %v1131 = vpack.c.bf16 %v886, %v883
      %v1132 = vpack.c.bf16 %v894, %v891
      %v1165 = vunpack.c.l.b16 %v1101
      %v1166 = vunpack.c.h.b16 %v1101
      %v1167 = vunpack.c.l.b16 %v1102
      %v1168 = vunpack.c.h.b16 %v1102
      %v1169 = vunpack.c.l.b16 %v1103
      %v1170 = vunpack.c.h.b16 %v1103
      %v1171 = vunpack.c.l.b16 %v1104
      %v1172 = vunpack.c.h.b16 %v1104
      %v1173 = vunpack.c.l.b16 %v1105
      %v1174 = vunpack.c.h.b16 %v1105
      %v1175 = vunpack.c.l.b16 %v1106
      %v1176 = vunpack.c.h.b16 %v1106
      %v1177 = vunpack.c.l.b16 %v1107
      %v1178 = vunpack.c.h.b16 %v1107
      %v1179 = vunpack.c.l.b16 %v1108
      %v1180 = vunpack.c.h.b16 %v1108
      %v1181 = vunpack.c.l.b16 %v1109
      %v1182 = vunpack.c.h.b16 %v1109
      %v1183 = vunpack.c.l.b16 %v1110
      %v1184 = vunpack.c.h.b16 %v1110
      %v1185 = vunpack.c.l.b16 %v1111
      %v1186 = vunpack.c.h.b16 %v1111
      %v1187 = vunpack.c.l.b16 %v1112
      %v1188 = vunpack.c.h.b16 %v1112
      %v1189 = vunpack.c.l.b16 %v1113
      %v1190 = vunpack.c.h.b16 %v1113
      %v1191 = vunpack.c.l.b16 %v1114
      %v1192 = vunpack.c.h.b16 %v1114
      %v1193 = vunpack.c.l.b16 %v1115
      %v1194 = vunpack.c.h.b16 %v1115
      %v1195 = vunpack.c.l.b16 %v1116
      %v1196 = vunpack.c.h.b16 %v1116
      %v1197 = vunpack.c.l.b16 %v1117
      %v1198 = vunpack.c.h.b16 %v1117
      %v1199 = vunpack.c.l.b16 %v1118
      %v1200 = vunpack.c.h.b16 %v1118
      %v1201 = vunpack.c.l.b16 %v1119
      %v1202 = vunpack.c.h.b16 %v1119
      %v1203 = vunpack.c.l.b16 %v1120
      %v1204 = vunpack.c.h.b16 %v1120
      %v1205 = vunpack.c.l.b16 %v1121
      %v1206 = vunpack.c.h.b16 %v1121
      %v1207 = vunpack.c.l.b16 %v1122
      %v1208 = vunpack.c.h.b16 %v1122
      %v1209 = vunpack.c.l.b16 %v1123
      %v1210 = vunpack.c.h.b16 %v1123
      %v1211 = vunpack.c.l.b16 %v1124
      %v1212 = vunpack.c.h.b16 %v1124
      %v1213 = vunpack.c.l.b16 %v1125
      %v1214 = vunpack.c.h.b16 %v1125
      %v1215 = vunpack.c.l.b16 %v1126
      %v1216 = vunpack.c.h.b16 %v1126
      %v1217 = vunpack.c.l.b16 %v1127
      %v1218 = vunpack.c.h.b16 %v1127
      %v1219 = vunpack.c.l.b16 %v1128
      %v1220 = vunpack.c.h.b16 %v1128
      %v1221 = vunpack.c.l.b16 %v1129
      %v1222 = vunpack.c.h.b16 %v1129
      %v1223 = vunpack.c.l.b16 %v1130
      %v1224 = vunpack.c.h.b16 %v1130
      %v1225 = vunpack.c.l.b16 %v1131
      %v1226 = vunpack.c.h.b16 %v1131
      %v1227 = vunpack.c.l.b16 %v1132
      %v1228 = vunpack.c.h.b16 %v1132
      %v1229 = vpack.c.b16 %v1165, %v1165
      %v1230 = vpack.c.b16 %v1166, %v1166
      %v1231 = vpack.c.b16 %v1167, %v1167
      %v1232 = vpack.c.b16 %v1168, %v1168
      %v1233 = vpack.c.b16 %v1169, %v1169
      %v1234 = vpack.c.b16 %v1170, %v1170
      %v1235 = vpack.c.b16 %v1171, %v1171
      %v1236 = vpack.c.b16 %v1172, %v1172
      %v1237 = vpack.c.b16 %v1173, %v1173
      %v1238 = vpack.c.b16 %v1174, %v1174
      %v1239 = vpack.c.b16 %v1175, %v1175
      %v1240 = vpack.c.b16 %v1176, %v1176
      %v1241 = vpack.c.b16 %v1177, %v1177
      %v1242 = vpack.c.b16 %v1178, %v1178
      %v1243 = vpack.c.b16 %v1179, %v1179
      %v1244 = vpack.c.b16 %v1180, %v1180
      %v1245 = vpack.c.b16 %v1181, %v1181
      %v1246 = vpack.c.b16 %v1182, %v1182
      %v1247 = vpack.c.b16 %v1183, %v1183
      %v1248 = vpack.c.b16 %v1184, %v1184
      %v1249 = vpack.c.b16 %v1185, %v1185
      %v1250 = vpack.c.b16 %v1186, %v1186
      %v1251 = vpack.c.b16 %v1187, %v1187
      %v1252 = vpack.c.b16 %v1188, %v1188
      %v1253 = vpack.c.b16 %v1189, %v1189
      %v1254 = vpack.c.b16 %v1190, %v1190
      %v1255 = vpack.c.b16 %v1191, %v1191
      %v1256 = vpack.c.b16 %v1192, %v1192
      %v1257 = vpack.c.b16 %v1193, %v1193
      %v1258 = vpack.c.b16 %v1194, %v1194
      %v1259 = vpack.c.b16 %v1195, %v1195
      %v1260 = vpack.c.b16 %v1196, %v1196
      %v1261 = vpack.c.b16 %v1197, %v1197
      %v1262 = vpack.c.b16 %v1198, %v1198
      %v1263 = vpack.c.b16 %v1199, %v1199
      %v1264 = vpack.c.b16 %v1200, %v1200
      %v1265 = vpack.c.b16 %v1201, %v1201
      %v1266 = vpack.c.b16 %v1202, %v1202
      %v1267 = vpack.c.b16 %v1203, %v1203
      %v1268 = vpack.c.b16 %v1204, %v1204
      %v1269 = vpack.c.b16 %v1205, %v1205
      %v1270 = vpack.c.b16 %v1206, %v1206
      %v1271 = vpack.c.b16 %v1207, %v1207
      %v1272 = vpack.c.b16 %v1208, %v1208
      %v1273 = vpack.c.b16 %v1209, %v1209
      %v1274 = vpack.c.b16 %v1210, %v1210
      %v1275 = vpack.c.b16 %v1211, %v1211
      %v1276 = vpack.c.b16 %v1212, %v1212
      %v1277 = vpack.c.b16 %v1213, %v1213
      %v1278 = vpack.c.b16 %v1214, %v1214
      %v1279 = vpack.c.b16 %v1215, %v1215
      %v1280 = vpack.c.b16 %v1216, %v1216
      %v1281 = vpack.c.b16 %v1217, %v1217
      %v1282 = vpack.c.b16 %v1218, %v1218
      %v1283 = vpack.c.b16 %v1219, %v1219
      %v1284 = vpack.c.b16 %v1220, %v1220
      %v1285 = vpack.c.b16 %v1221, %v1221
      %v1286 = vpack.c.b16 %v1222, %v1222
      %v1287 = vpack.c.b16 %v1223, %v1223
      %v1288 = vpack.c.b16 %v1224, %v1224
      %v1289 = vpack.c.b16 %v1225, %v1225
      %v1290 = vpack.c.b16 %v1226, %v1226
      %v1291 = vpack.c.b16 %v1227, %v1227
      %v1292 = vpack.c.b16 %v1228, %v1228
      %1357 = vst [vmem:[%s256] sm:$0xf] %v1229
      %1358 = vst [vmem:[%s256 + $0x4] sm:$0xf] %v1230
      %1359 = vst [vmem:[%s256 + $0x8] sm:$0xf] %v1231
      %1360 = vst [vmem:[%s256 + $0xc] sm:$0xf] %v1232
      %1361 = vst [vmem:[%s256 + $0x10] sm:$0xf] %v1233
      %1362 = vst [vmem:[%s256 + $0x14] sm:$0xf] %v1234
      %1363 = vst [vmem:[%s256 + $0x18] sm:$0xf] %v1235
      %1364 = vst [vmem:[%s256 + $0x1c] sm:$0xf] %v1236
      %1365 = vst [vmem:[%s256 + $0x20] sm:$0xf] %v1237
      %1366 = vst [vmem:[%s256 + $0x24] sm:$0xf] %v1238
      %1367 = vst [vmem:[%s256 + $0x28] sm:$0xf] %v1239
      %1368 = vst [vmem:[%s256 + $0x2c] sm:$0xf] %v1240
      %1369 = vst [vmem:[%s256 + $0x30] sm:$0xf] %v1241
      %1370 = vst [vmem:[%s256 + $0x34] sm:$0xf] %v1242
      %1371 = vst [vmem:[%s256 + $0x38] sm:$0xf] %v1243
      %1372 = vst [vmem:[%s256 + $0x3c] sm:$0xf] %v1244
      %1373 = vst [vmem:[%s256 + $0x40] sm:$0xf] %v1245
      %1374 = vst [vmem:[%s256 + $0x44] sm:$0xf] %v1246
      %1375 = vst [vmem:[%s256 + $0x48] sm:$0xf] %v1247
      %1376 = vst [vmem:[%s256 + $0x4c] sm:$0xf] %v1248
      %1377 = vst [vmem:[%s256 + $0x50] sm:$0xf] %v1249
      %1378 = vst [vmem:[%s256 + $0x54] sm:$0xf] %v1250
      %1379 = vst [vmem:[%s256 + $0x58] sm:$0xf] %v1251
      %1380 = vst [vmem:[%s256 + $0x5c] sm:$0xf] %v1252
      %1381 = vst [vmem:[%s256 + $0x60] sm:$0xf] %v1253
      %1382 = vst [vmem:[%s256 + $0x64] sm:$0xf] %v1254
      %1383 = vst [vmem:[%s256 + $0x68] sm:$0xf] %v1255
      %1384 = vst [vmem:[%s256 + $0x6c] sm:$0xf] %v1256
      %1385 = vst [vmem:[%s256 + $0x70] sm:$0xf] %v1257
      %1386 = vst [vmem:[%s256 + $0x74] sm:$0xf] %v1258
      %1387 = vst [vmem:[%s256 + $0x78] sm:$0xf] %v1259
      %1388 = vst [vmem:[%s256 + $0x7c] sm:$0xf] %v1260
      %1389 = vst [vmem:[%s256 + $0x80] sm:$0xf] %v1261
      %1390 = vst [vmem:[%s256 + $0x84] sm:$0xf] %v1262
      %1391 = vst [vmem:[%s256 + $0x88] sm:$0xf] %v1263
      %1392 = vst [vmem:[%s256 + $0x8c] sm:$0xf] %v1264
      %1393 = vst [vmem:[%s256 + $0x90] sm:$0xf] %v1265
      %1394 = vst [vmem:[%s256 + $0x94] sm:$0xf] %v1266
      %1395 = vst [vmem:[%s256 + $0x98] sm:$0xf] %v1267
      %1396 = vst [vmem:[%s256 + $0x9c] sm:$0xf] %v1268
      %1397 = vst [vmem:[%s256 + $0xa0] sm:$0xf] %v1269
      %1398 = vst [vmem:[%s256 + $0xa4] sm:$0xf] %v1270
      %1399 = vst [vmem:[%s256 + $0xa8] sm:$0xf] %v1271
      %1400 = vst [vmem:[%s256 + $0xac] sm:$0xf] %v1272
      %1401 = vst [vmem:[%s256 + $0xb0] sm:$0xf] %v1273
      %1402 = vst [vmem:[%s256 + $0xb4] sm:$0xf] %v1274
      %1403 = vst [vmem:[%s256 + $0xb8] sm:$0xf] %v1275
      %1404 = vst [vmem:[%s256 + $0xbc] sm:$0xf] %v1276
      %1405 = vst [vmem:[%s256 + $0xc0] sm:$0xf] %v1277
      %1406 = vst [vmem:[%s256 + $0xc4] sm:$0xf] %v1278
      %1407 = vst [vmem:[%s256 + $0xc8] sm:$0xf] %v1279
      %1408 = vst [vmem:[%s256 + $0xcc] sm:$0xf] %v1280
      %1409 = vst [vmem:[%s256 + $0xd0] sm:$0xf] %v1281
      %1410 = vst [vmem:[%s256 + $0xd4] sm:$0xf] %v1282
      %1411 = vst [vmem:[%s256 + $0xd8] sm:$0xf] %v1283
      %1412 = vst [vmem:[%s256 + $0xdc] sm:$0xf] %v1284
      %1413 = vst [vmem:[%s256 + $0xe0] sm:$0xf] %v1285
      %1414 = vst [vmem:[%s256 + $0xe4] sm:$0xf] %v1286
      %1415 = vst [vmem:[%s256 + $0xe8] sm:$0xf] %v1287
      %1416 = vst [vmem:[%s256 + $0xec] sm:$0xf] %v1288
      %1417 = vst [vmem:[%s256 + $0xf0] sm:$0xf] %v1289
      %1418 = vst [vmem:[%s256 + $0xf4] sm:$0xf] %v1290
      %1419 = vst [vmem:[%s256 + $0xf8] sm:$0xf] %v1291
      %1420 = vst [vmem:[%s256 + $0xfc] sm:$0xf] %v1292
      %s1421 = smul.u32 64, %s21
      %p1422 = scmp.lt.s32.totalorder %s20, 1
      %s1423 = scalar_select %p1422, %s20, 1
      %p1424 = scmp.lt.s32.totalorder %s1421, 63
      %s1425 = scalar_select %p1424, %s1421, 63
      %s1426 = smul.addr %s1423, 64
      %s1427 = sadd.s32 %s1425, %s1426
      %s1428 = smul.addr %s1427, 4
      %s1429 = scalar_lea.vmem %s2, %s1428
      %p1430 = scmp.lt.s32.totalorder %s20, 1
      %s1431 = scalar_select %p1430, %s20, 1
      %p1432 = scmp.lt.s32.totalorder %s21, 0
      %s1433 = scalar_select %p1432, %s21, 0
      %s1434 = sadd.s32 %s1433, %s1431
      %s1435 = scalar_lea.vmem %s3, %s1434
      %p1436 = scmp.lt.s32.totalorder %s20, 1
      %s1437 = scalar_select %p1436, %s20, 1
      %p1438 = scmp.lt.s32.totalorder %s21, 0
      %s1439 = scalar_select %p1438, %s21, 0
      %s1440 = sadd.s32 %s1439, %s1437
      %s1441 = scalar_lea.vmem %s4, %s1440
      // Predicated region
      $region29: #{conv_transpose_block.1} parent=27 // pred_check
        %p1442 = pneg %p97
      $region30: #{conv_transpose_block.1} parent=27 // pred_check_branch
        %1444 = sbr.rel (%p1442) target = $region32
      $region31: #{conv_transpose_block.1} parent=27 // pred_region
        %s1445 = smul.u32 64, %s21
      $region32: #{conv_transpose_block.1} parent=27 // pred_fallthru
        _
      // Predicated region
      $region33: #{conv_transpose_block.1} parent=27 // pred_check
        %p1446 = pneg %p125
      $region34: #{conv_transpose_block.1} parent=27 // pred_check_branch
        %1448 = sbr.rel (%p1446) target = $region36
      $region35: #{conv_transpose_block.1} parent=27 // pred_region
        _
      $region36: #{conv_transpose_block.1} parent=27 // pred_fallthru
        _
      // Predicated region
      $region37: #{conv_transpose_block.1} parent=27 // pred_check
        %p1449 = pneg %p153
      $region38: #{conv_transpose_block.1} parent=27 // pred_check_branch
        %1451 = sbr.rel (%p1449) target = $region40
      $region39: #{conv_transpose_block.1} parent=27 // pred_region
        _
      $region40: #{conv_transpose_block.1} parent=27 // pred_fallthru
        _
    $region28: #{conv_transpose_block.1} parent=5 // pred_fallthru
      _
    %p1452 = scmp.le.s32.totalorder 2, %s11
    // Predicated region
    $region41: #{conv_transpose_block.1} parent=5 // pred_check
      %p1453 = pneg %p1452
    $region42: #{conv_transpose_block.1} parent=5 // pred_check_branch
      %1455 = sbr.rel (%p1453) target = $region44
    $region43: #{conv_transpose_block.1} parent=5 // pred_region
      %s1456 = ssub.s32 %s11, 2
      // Predicated region
      $region45: #{conv_transpose_block.1} parent=43 // pred_check
        %p1457 = pneg %p103
      $region46: #{conv_transpose_block.1} parent=43 // pred_check_branch
        %1459 = sbr.rel (%p1457) target = $region48
      $region47: #{conv_transpose_block.1} parent=43 // pred_region
        %s1460 = smul.u32 64, %s23
        %p1461 = scmp.lt.s32.totalorder %s22, 1
        %s1462 = scalar_select %p1461, %s22, 1
        %p1463 = scmp.lt.s32.totalorder %s1460, 63
        %s1464 = scalar_select %p1463, %s1460, 63
        %s1465 = smul.addr %s1462, 64
        %s1466 = sadd.s32 %s1464, %s1465
        %s1467 = smul.addr %s1466, 4
        %s1468 = scalar_lea.vmem %s2, %s1467
      $region48: #{conv_transpose_block.1} parent=43 // pred_fallthru
        _
      // Predicated region
      $region49: #{conv_transpose_block.1} parent=43 // pred_check
        %p1469 = pneg %p131
      $region50: #{conv_transpose_block.1} parent=43 // pred_check_branch
        %1471 = sbr.rel (%p1469) target = $region52
      $region51: #{conv_transpose_block.1} parent=43 // pred_region
        %p1472 = scmp.lt.s32.totalorder %s22, 1
        %s1473 = scalar_select %p1472, %s22, 1
        %p1474 = scmp.lt.s32.totalorder %s23, 0
        %s1475 = scalar_select %p1474, %s23, 0
        %s1476 = sadd.s32 %s1475, %s1473
        %s1477 = scalar_lea.vmem %s3, %s1476
      $region52: #{conv_transpose_block.1} parent=43 // pred_fallthru
        _
      // Predicated region
      $region53: #{conv_transpose_block.1} parent=43 // pred_check
        %p1478 = pneg %p159
      $region54: #{conv_transpose_block.1} parent=43 // pred_check_branch
        %1480 = sbr.rel (%p1478) target = $region56
      $region55: #{conv_transpose_block.1} parent=43 // pred_region
        %p1481 = scmp.lt.s32.totalorder %s22, 1
        %s1482 = scalar_select %p1481, %s22, 1
        %p1483 = scmp.lt.s32.totalorder %s23, 0
        %s1484 = scalar_select %p1483, %s23, 0
        %s1485 = sadd.s32 %s1484, %s1482
        %s1486 = scalar_lea.vmem %s4, %s1485
      $region56: #{conv_transpose_block.1} parent=43 // pred_fallthru
        _
    $region44: #{conv_transpose_block.1} parent=5 // pred_fallthru
      _
  $region6: #{conv_transpose_block.1} parent=0 // loop_footer
    %s15 = sadd.s32 1, %s11
  $region7: #{conv_transpose_block.1} parent=0 // loop_footer_branch
    %10 = sbr.rel target = $region3
  $region8: #{conv_transpose_block.1} parent=0 // loop_exit
    _

</llo_original>
